<compile_context>
chip_gen: v7x
topology: tpu7x:2x2x1
jax: 0.10.0
libtpu: 0.0.40
codegen_flags: <defaults>
</compile_context>

<pallas_src>
import functools

import jax
import jax.numpy as jnp
from jax.experimental import pallas as pl
from jax.experimental.pallas import tpu as pltpu

ALPHA = 0.6
GAMMA = 2.0
EPSILON = 1e-09
SMOOTHING = 0.2

_LANES = 128
_SUBLANES = 8
# 2048x128 f32 tile = 1 MiB per input buffer; 2 inputs x 2 pipeline buffers
# = 4 MiB, comfortably inside every generation's scoped-VMEM budget while
# large enough (>=512 rows) to sit on the HBM-bandwidth roofline.
_MAX_TILE_ROWS = 2048


def _pow_static(v, gamma):
    """Power with a compile-time exponent; integer gammas avoid exp/log on EUP."""
    g = float(gamma)
    if g == 1.0:
        return v
    if g.is_integer() and g >= 1.0:
        out = v
        for _ in range(int(g) - 1):
            out = out * v
        return out
    return jnp.power(v, g)


def _focal_tile_kernel(x_ref, t_ref, o_ref, *, alpha, gamma, epsilon,
                       smoothing, tile_rows, n_valid, n_covered):
    x = x_ref[...].astype(jnp.float32)
    t = t_ref[...].astype(jnp.float32)

    # label smoothing
    multi_hot = (1.0 - smoothing) * t + smoothing * 0.5
    zero_hot = 1.0 - multi_hot

    # sigmoid via a single EUP tanh (saves the exp + reciprocal pair); the
    # eps placement in BOTH logs is identical to the PyTorch reference.
    p = 0.5 * jnp.tanh(0.5 * x) + 0.5
    q = 1.0 - p

    pos = -alpha * multi_hot * _pow_static(q, gamma) * jnp.log(p + epsilon)
    neg = -(1.0 - alpha) * zero_hot * _pow_static(p, gamma) * jnp.log(q + epsilon)
    loss = pos + neg

    # Zero out (a) the small lane/sublane zero-pad tail and (b) the garbage
    # region of the partial last block, so the mean covers exactly n_valid
    # elements.  Statically skipped when the grid covers exactly n_valid.
    if n_valid != n_covered:
        i = pl.program_id(0)
        row = i * tile_rows + jax.lax.broadcasted_iota(
            jnp.int32, (tile_rows, _LANES), 0)
        lane = jax.lax.broadcasted_iota(jnp.int32, (tile_rows, _LANES), 1)
        last_row = (n_valid - 1) // _LANES          # static python int
        tail = n_valid - last_row * _LANES          # static, in 1..128
        if tail == _LANES:
            valid = row <= last_row
        else:
            valid = (row < last_row) | ((row == last_row) & (lane < tail))
        loss = jnp.where(valid, loss, 0.0)

    # Partial reduction along the leading axis only (vreg-wise VPU adds);
    # the tiny cross-lane/sublane reduce happens once in the wrapper.
    o_ref[...] = jnp.sum(
        loss.reshape(tile_rows // _SUBLANES, _SUBLANES, _LANES), axis=0)


def binary_focal_loss(logits, target, *, alpha=ALPHA, gamma=GAMMA,
                      epsilon=EPSILON, smoothing=SMOOTHING):
    """Pallas TPU implementation of BinaryFocalLoss.forward. Returns a scalar."""
    assert logits.shape == target.shape, "target must match logits shape [B, C]"
    n = int(logits.size)
    assert n > 0
    # int32 row index inside the kernel mask bounds the supported size.
    assert n < (1 << 31) * _LANES

    # Lane-dense repack: flatten to (arr_rows, 128).  Only the tail up to the
    # next (8,128) boundary is zero-padded; when n is already aligned the
    # reshape is the only wrapper-side op (no extra HBM pass).
    rows = -(-n // _LANES)
    arr_rows = max(rows, _SUBLANES)
    padded_len = arr_rows * _LANES

    x_flat = jnp.reshape(logits, (-1,))
    t_flat = jnp.reshape(target, (-1,))
    pad = padded_len - n
    if pad:
        x_flat = jnp.pad(x_flat, (0, pad))
        t_flat = jnp.pad(t_flat, (0, pad))
    x2d = x_flat.reshape(arr_rows, _LANES)   # dtype preserved (bf16 stays bf16)
    t2d = t_flat.reshape(arr_rows, _LANES)

    # tile_rows is always >= 8 and a multiple of 8; the last grid block may be
    # partial (its OOB region is masked in-kernel).
    tile_rows = min(_MAX_TILE_ROWS, (arr_rows // _SUBLANES) * _SUBLANES)
    num_tiles = -(-arr_rows // tile_rows)
    n_covered = num_tiles * tile_rows * _LANES

    kernel = functools.partial(
        _focal_tile_kernel,
        alpha=float(alpha), gamma=float(gamma), epsilon=float(epsilon),
        smoothing=float(smoothing), tile_rows=tile_rows,
        n_valid=n, n_covered=n_covered)

    out_bytes = num_tiles * _SUBLANES * _LANES * 4
    in_bytes = (x2d.size * x2d.dtype.itemsize + t2d.size * t2d.dtype.itemsize)

    partials = pl.pallas_call(
        kernel,
        out_shape=jax.ShapeDtypeStruct((num_tiles * _SUBLANES, _LANES),
                                       jnp.float32),
        grid=(num_tiles,),
        in_specs=[
            pl.BlockSpec((tile_rows, _LANES), lambda i: (i, 0)),
            pl.BlockSpec((tile_rows, _LANES), lambda i: (i, 0)),
        ],
        out_specs=pl.BlockSpec((_SUBLANES, _LANES), lambda i: (i, 0)),
        compiler_params=pltpu.CompilerParams(
            # Independent per-tile partial sums.  On v7x, verify megacore
            # sharding; switch to pltpu.CORE_PARALLEL if a single TC is used.
            dimension_semantics=("parallel",),
            vmem_limit_bytes=32 * 1024 * 1024,
        ),
        cost_estimate=pl.CostEstimate(
            flops=20 * n_covered,
            transcendentals=3 * n_covered,
            bytes_accessed=in_bytes + out_bytes,
        ),
    )(x2d, t2d)

    # Tiny final reduce + mean over the *valid* element count.
    return jnp.sum(partials) / jnp.float32(n)


def binary_focal_loss_ref(logits, target, *, alpha=ALPHA, gamma=GAMMA,
                          epsilon=EPSILON, smoothing=SMOOTHING):
    """Pure-JAX reference matching the PyTorch module."""
    logits = logits.astype(jnp.float32)
    target = target.astype(jnp.float32)
    mh = (1.0 - smoothing) * target + smoothing / 2.0
    p = jax.nn.sigmoid(logits)
    zh = 1.0 - mh
    loss = -alpha * mh * jnp.power(1.0 - p, gamma) * jnp.log(p + epsilon)
    loss += -(1.0 - alpha) * zh * jnp.power(p, gamma) * jnp.log(1.0 - p + epsilon)
    return jnp.mean(loss)


if __name__ == "__main__":
    key = jax.random.PRNGKey(0)
    k1, k2, k3, k4 = jax.random.split(key, 4)

    # Small case matching the module's intended shapes.
    batch_size, num_cls = 8, 16
    logits = jax.random.normal(k1, (batch_size, num_cls), dtype=jnp.float32)
    target = (jax.random.uniform(k2, (batch_size, num_cls)) > 0.5).astype(
        jnp.float32)

    out = jax.block_until_ready(binary_focal_loss(logits, target))
    ref = binary_focal_loss_ref(logits, target)
    assert jnp.allclose(out, ref, rtol=1e-4, atol=1e-6), (out, ref)

    # Ragged, multi-tile, bf16 case (exercises tail pad, partial last block,
    # and the in-kernel validity mask).
    b2, c2 = 300, 130
    logits2 = jax.random.normal(k3, (b2, c2), dtype=jnp.bfloat16)
    target2 = (jax.random.uniform(k4, (b2, c2)) > 0.5).astype(jnp.bfloat16)
    out2 = jax.block_until_ready(binary_focal_loss(logits2, target2))
    ref2 = binary_focal_loss_ref(logits2, target2)
    assert jnp.allclose(out2, ref2, rtol=1e-3, atol=1e-5), (out2, ref2)

    print("KERNEL_OK")
</pallas_src>

<mosaic_0001>
module attributes {stable_mosaic.version = 11 : i64} {
  func.func @_focal_tile_kernel(%arg0: i32, %arg1: memref<8x128xf32, #tpu.memory_space<vmem>>, %arg2: memref<8x128xf32, #tpu.memory_space<vmem>>, %arg3: memref<8x128xf32, #tpu.memory_space<vmem>>) attributes {dimension_semantics = [#tpu.dimension_semantics<parallel>], iteration_bounds = array<i64: 1>, scalar_prefetch = 0 : i64, scratch_operands = 0 : i64, tpu.core_type = #tpu.core_type<tc>, window_params = [{transform_indices = @transform_0, window_bounds = array<i64: 8, 128>}, {transform_indices = @transform_1, window_bounds = array<i64: 8, 128>}, {transform_indices = @transform_2, window_bounds = array<i64: 8, 128>}]} {
    %c0 = arith.constant 0 : index
    %c0_0 = arith.constant 0 : index
    %0 = vector.load %arg1[%c0, %c0_0] : memref<8x128xf32, #tpu.memory_space<vmem>>, vector<8x128xf32>
    %c0_1 = arith.constant 0 : index
    %c0_2 = arith.constant 0 : index
    %1 = vector.load %arg2[%c0_1, %c0_2] : memref<8x128xf32, #tpu.memory_space<vmem>>, vector<8x128xf32>
    %cst = arith.constant 8.000000e-01 : f32
    %2 = vector.broadcast %cst : f32 to vector<8x128xf32>
    %3 = arith.mulf %2, %1 : vector<8x128xf32>
    %cst_3 = arith.constant 1.000000e-01 : f32
    %4 = vector.broadcast %cst_3 : f32 to vector<8x128xf32>
    %5 = arith.addf %3, %4 : vector<8x128xf32>
    %cst_4 = arith.constant 1.000000e+00 : f32
    %6 = vector.broadcast %cst_4 : f32 to vector<8x128xf32>
    %7 = arith.subf %6, %5 : vector<8x128xf32>
    %cst_5 = arith.constant 5.000000e-01 : f32
    %8 = vector.broadcast %cst_5 : f32 to vector<8x128xf32>
    %9 = arith.mulf %8, %0 : vector<8x128xf32>
    %10 = math.tanh %9 : vector<8x128xf32>
    %cst_6 = arith.constant 5.000000e-01 : f32
    %11 = vector.broadcast %cst_6 : f32 to vector<8x128xf32>
    %12 = arith.mulf %11, %10 : vector<8x128xf32>
    %cst_7 = arith.constant 5.000000e-01 : f32
    %13 = vector.broadcast %cst_7 : f32 to vector<8x128xf32>
    %14 = arith.addf %12, %13 : vector<8x128xf32>
    %cst_8 = arith.constant 1.000000e+00 : f32
    %15 = vector.broadcast %cst_8 : f32 to vector<8x128xf32>
    %16 = arith.subf %15, %14 : vector<8x128xf32>
    %cst_9 = arith.constant -6.000000e-01 : f32
    %17 = vector.broadcast %cst_9 : f32 to vector<8x128xf32>
    %18 = arith.mulf %17, %5 : vector<8x128xf32>
    %19 = arith.mulf %16, %16 : vector<8x128xf32>
    %20 = arith.mulf %18, %19 : vector<8x128xf32>
    %cst_10 = arith.constant 9.99999971E-10 : f32
    %21 = vector.broadcast %cst_10 : f32 to vector<8x128xf32>
    %22 = arith.addf %14, %21 : vector<8x128xf32>
    %23 = math.log %22 : vector<8x128xf32>
    %24 = arith.mulf %20, %23 : vector<8x128xf32>
    %cst_11 = arith.constant -4.000000e-01 : f32
    %25 = vector.broadcast %cst_11 : f32 to vector<8x128xf32>
    %26 = arith.mulf %25, %7 : vector<8x128xf32>
    %27 = arith.mulf %14, %14 : vector<8x128xf32>
    %28 = arith.mulf %26, %27 : vector<8x128xf32>
    %cst_12 = arith.constant 9.99999971E-10 : f32
    %29 = vector.broadcast %cst_12 : f32 to vector<8x128xf32>
    %30 = arith.addf %16, %29 : vector<8x128xf32>
    %31 = math.log %30 : vector<8x128xf32>
    %32 = arith.mulf %28, %31 : vector<8x128xf32>
    %33 = arith.addf %24, %32 : vector<8x128xf32>
    %c8_i32 = arith.constant 8 : i32
    %34 = arith.muli %arg0, %c8_i32 : i32
    %35 = tpu.iota {dimensions = array<i32: 0>} : vector<8x128xi32>
    %36 = vector.broadcast %34 : i32 to vector<8x128xi32>
    %37 = arith.addi %36, %35 : vector<8x128xi32>
    %c0_i32 = arith.constant 0 : i32
    %38 = vector.broadcast %c0_i32 : i32 to vector<8x128xi32>
    %39 = arith.cmpi sle, %37, %38 : vector<8x128xi32>
    %cst_13 = arith.constant 0.000000e+00 : f32
    %40 = vector.broadcast %cst_13 : f32 to vector<8x128xf32>
    %41 = arith.select %39, %33, %40 : vector<8x128xi1>, vector<8x128xf32>
    %42 = vector.shape_cast %41 : vector<8x128xf32> to vector<1x8x128xf32>
    %cst_14 = arith.constant dense<0.000000e+00> : vector<8x128xf32>
    %43 = vector.multi_reduction <add>, %42, %cst_14 [0] : vector<1x8x128xf32> to vector<8x128xf32>
    %c0_15 = arith.constant 0 : index
    %c0_16 = arith.constant 0 : index
    %44 = vector.load %arg3[%c0_15, %c0_16] : memref<8x128xf32, #tpu.memory_space<vmem>>, vector<8x128xf32>
    tpu.vector_store %arg3[%c0_15, %c0_16], %43 {strides = array<i32>} : memref<8x128xf32, #tpu.memory_space<vmem>>, vector<8x128xf32>,
    return
  }
  func.func @transform_0(%arg0: i32) -> (i32, i32) {
    %c0_i32 = arith.constant 0 : i32
    %c0_i32_0 = arith.constant 0 : i32
    return %arg0, %c0_i32 : i32, i32
  }
  func.func @transform_1(%arg0: i32) -> (i32, i32) {
    %c0_i32 = arith.constant 0 : i32
    %c0_i32_0 = arith.constant 0 : i32
    return %arg0, %c0_i32 : i32, i32
  }
  func.func @transform_2(%arg0: i32) -> (i32, i32) {
    %c0_i32 = arith.constant 0 : i32
    %c0_i32_0 = arith.constant 0 : i32
    return %arg0, %c0_i32 : i32, i32
  }
}

</mosaic_0001>

<llo_original>
// kernel: tpu_custom_call.1
$region0: #{tpu_custom_call.1}
  #allocation0 [shape = 'u32[]', space=smem, size = 0x4, offset = 0x4, fixed_abs, tag = 'smem constant byte address 0x4 - core index']
  #allocation1 [shape = 'u32[144,128]{1,0:T(1,128)}', space=vmem, size = 0x12000, scoped, tag = 'internal scratch']
  %s0 = inlined_call_operand.hbm [shape: f32[8,128], index: 0, kind: input, shape index: {}]
  %s1 = inlined_call_operand.hbm [shape: f32[8,128], index: 1, kind: input, shape index: {}]
  %s2 = inlined_call_operand.hbm [shape: f32[8,128], index: 2, kind: output, shape index: {}]
  %s3 = sld [smem:[#allocation0]]
  $region26: #{tpu_custom_call.1} parent=0
    _
  %s5 = ssub.s32 1, %s3
  %s6 = scalar_select 0, %s5, %s3
  $region1: #{tpu_custom_call.1} parent=0
    #allocation2 [shape = 'u8[4096]{0}', space=vmem, size = 0x1000, scoped, tag = 'input window, operand 0, single buffered']
    #allocation3 [shape = 's32[1]{0}', space=sflag, size = 0x4, scoped, tag = 'scoped memory for tpu_custom_call.1']
    #allocation4 [shape = 's32[1]{0}', space=sflag, size = 0x4, scoped, tag = 'scoped memory for tpu_custom_call.1']
    #allocation5 [shape = 'u8[4096]{0}', space=vmem, size = 0x1000, scoped, tag = 'input window, operand 1, single buffered']
    #allocation6 [shape = 's32[1]{0}', space=sflag, size = 0x4, scoped, tag = 'scoped memory for tpu_custom_call.1']
    #allocation7 [shape = 'u8[4096]{0}', space=vmem, size = 0x1000, scoped, tag = 'output window, operand 0, single buffered']
    %7 = vsyncpa [#allocation3], 0
    %8 = vsyncpa [#allocation6], 0
    %9 = vsyncpa [#allocation4], 0
    // Predicated region
    $region2: #{tpu_custom_call.1} parent=1 // pred_check
      _
    $region3: #{tpu_custom_call.1} parent=1 // pred_check_branch
      %11 = sbr.rel (0) target = $region5
    $region4: #{tpu_custom_call.1} parent=1 // pred_region
      %s13 = ssub.s32 128, 128
      %14 = vsyncadd [#allocation3], %s13
      %s16 = sshll.u32 [#allocation2], 4
      %s17 = int_to_ptr.vmem [resolvable:$true] %s16
      %19 = dma.hbm_to_vmem [thread:$0]  %s0, 128, %s17, [#allocation3]
    $region5: #{tpu_custom_call.1} parent=1 // pred_fallthru
      _
    // Predicated region
    $region6: #{tpu_custom_call.1} parent=1 // pred_check
      _
    $region7: #{tpu_custom_call.1} parent=1 // pred_check_branch
      %21 = sbr.rel (0) target = $region9
    $region8: #{tpu_custom_call.1} parent=1 // pred_region
      %s23 = ssub.s32 128, 128
      %24 = vsyncadd [#allocation6], %s23
      %s26 = sshll.u32 [#allocation5], 4
      %s27 = int_to_ptr.vmem [resolvable:$true] %s26
      %29 = dma.hbm_to_vmem [thread:$0]  %s1, 128, %s27, [#allocation6]
    $region9: #{tpu_custom_call.1} parent=1 // pred_fallthru
      _
    // Predicated region
    $region10: #{tpu_custom_call.1} parent=1 // pred_check
      _
    $region11: #{tpu_custom_call.1} parent=1 // pred_check_branch
      %31 = sbr.rel (0) target = $region13
    $region12: #{tpu_custom_call.1} parent=1 // pred_region
      %32 = dma.done [#allocation3], 128
    $region13: #{tpu_custom_call.1} parent=1 // pred_fallthru
      _
    // Predicated region
    $region14: #{tpu_custom_call.1} parent=1 // pred_check
      _
    $region15: #{tpu_custom_call.1} parent=1 // pred_check_branch
      %34 = sbr.rel (0) target = $region17
    $region16: #{tpu_custom_call.1} parent=1 // pred_region
      %35 = dma.done [#allocation6], 128
    $region17: #{tpu_custom_call.1} parent=1 // pred_fallthru
      _
    %v36 = vld [vmem:[#allocation2] sm:$0xff]
    %v37 = vld [vmem:[#allocation5] sm:$0xff]
    %v38 = vmul.f32 %v37, 0.8
    %v39 = vadd.f32 %v38, 0.1
    %v40 = vsub.f32 1.0, %v39
    %v41 = vmul.f32 %v36, 0.5
    %v42 = vtanh.pop %v41
    %v43 = vmul.f32 %v42, 0.5
    %v44 = vadd.f32 %v43, 0.5
    %v45 = vsub.f32 1.0, %v44
    %v46 = vmul.f32 %v39, -0.6
    %v47 = vmul.f32 %v45, %v45
    %v48 = vmul.f32 %v46, %v47
    %v49 = vadd.f32 %v44, 1e-09
    %v50 = vlog2.pop %v49
    %v51 = vmul.f32 %v50, 0.6931472
    %v52 = vmul.f32 %v48, %v51
    %v53 = vmul.f32 %v40, -0.4
    %v54 = vmul.f32 %v44, %v44
    %v55 = vmul.f32 %v53, %v54
    %v56 = vadd.f32 %v45, 1e-09
    %v57 = vlog2.pop %v56
    %v58 = vmul.f32 %v57, 0.6931472
    %v59 = vmul.f32 %v55, %v58
    %v60 = vadd.f32 %v52, %v59
    %s61 = smul.u32 0, 8
    %v62 = vlaneseq
    %v63 = vshrl.u32 %v62, 7
    %v64 = vstv %s61
    %v65 = vadd.s32 %v64, %v63
    %vm66 = vcmp.le.s32.totalorder %v65, 0
    %v67 = vsel %vm66, %v60, 0.0
    %v68 = vadd.f32 %v67, 0.0
    %69 = vst [vmem:[#allocation7] sm:$0xff] %v68
    // Predicated region
    $region18: #{tpu_custom_call.1} parent=1 // pred_check
      _
    $region19: #{tpu_custom_call.1} parent=1 // pred_check_branch
      %71 = sbr.rel (0) target = $region21
    $region20: #{tpu_custom_call.1} parent=1 // pred_region
      %s73 = ssub.s32 128, 128
      %74 = vsyncadd [#allocation4], %s73
      %s76 = sshll.u32 [#allocation7], 4
      %s77 = int_to_ptr.vmem [resolvable:$true] %s76
      %79 = dma.vmem_to_hbm [thread:$0]  %s77, 128, %s2, [#allocation4]
    $region21: #{tpu_custom_call.1} parent=1 // pred_fallthru
      _
    // Predicated region
    $region22: #{tpu_custom_call.1} parent=1 // pred_check
      _
    $region23: #{tpu_custom_call.1} parent=1 // pred_check_branch
      %81 = sbr.rel (0) target = $region25
    $region24: #{tpu_custom_call.1} parent=1 // pred_region
      %82 = dma.done [#allocation4], 128
    $region25: #{tpu_custom_call.1} parent=1 // pred_fallthru
      _
    %83 = vsyncpa [#allocation3], 1
    %84 = vsyncpa [#allocation6], 1
    %85 = vsyncpa [#allocation4], 1

</llo_original>
